<compile_context>
chip_gen: v7x
topology: tpu7x:2x2x1
jax: 0.10.0
libtpu: 0.0.40
codegen_flags: <defaults>
</compile_context>

<pallas_src>
import jax
import jax.numpy as jnp
from jax import lax
from jax.experimental import pallas as pl
from jax.experimental.pallas import tpu as pltpu

NUM_CATEGORIES = 5
OUT_DIM = NUM_CATEGORIES * NUM_CATEGORIES          # 25 (required by forward)
H1, H2 = 128, 64                                   # per-branch hidden sizes
FUSED_H1 = 2 * H1                                  # 256: one full MXU pass
FUSED_H2 = 2 * H2                                  # 128
FUSED_OUT = 32                                     # 25 score logits + 5 cate logits + pad
SLAB_W = 128                                       # lane-dense packed output width

# lane offsets inside the packed (B, 128) output slab
LOGITS_OFF, PROBAS_OFF, CATE_OFF, LABEL_OFF = 0, 32, 64, 96


def _softmax_last(x):
    m = jnp.max(x, axis=-1, keepdims=True)
    e = jnp.exp(x - m)
    # divide on the EUP slot instead of a VPU divide sequence
    return e * pl.reciprocal(jnp.sum(e, axis=-1, keepdims=True), approx=True)


def multihead_kernel(x_ref, w1_ref, w2_ref, w3_ref, expand_ref, slab_ref):
    # Fused 3-layer MLP for both branches (score ++ category): bf16 operands,
    # f32 accumulation on the MXU.
    x = x_ref[...]
    h = jnp.dot(x, w1_ref[...], preferred_element_type=jnp.float32)           # (TB, 256)
    h = jnp.dot(h.astype(w2_ref.dtype), w2_ref[...],
                preferred_element_type=jnp.float32)                           # (TB, 128)
    out3 = jnp.dot(h.astype(w3_ref.dtype), w3_ref[...],
                   preferred_element_type=jnp.float32)                        # (TB, 32)

    logits = out3[:, :OUT_DIM]                                                # (TB, 25)
    cate_logits = out3[:, OUT_DIM:OUT_DIM + NUM_CATEGORIES]                   # (TB, 5)

    probas = _softmax_last(logits)                                            # f32
    cate = _softmax_last(cate_logits)                                         # f32

    # repeat_interleave(cate, 5, dim=-1) as a tiny matmul with the constant
    # 0/1 expansion matrix precomputed once in the wrapper (avoids cross-lane
    # gathers in the kernel).
    cate_expand = jnp.dot(cate, expand_ref[...],
                          preferred_element_type=jnp.float32)                 # (TB, 25)
    sum_cate_score = cate_expand + probas

    # first-occurrence argmax along the last dim (matches torch.argmax)
    max_val = jnp.max(sum_cate_score, axis=-1, keepdims=True)
    idx = lax.broadcasted_iota(jnp.int32, sum_cate_score.shape, 1)
    masked = jnp.where(sum_cate_score == max_val, idx, jnp.iinfo(jnp.int32).max)
    labels = jnp.min(masked, axis=-1, keepdims=True).astype(jnp.float32)      # (TB, 1)

    # single lane-dense (TB, 128) packed output slab -> one unmasked HBM
    # writeback.  (The narrow in-VMEM stores below are cheap masked vst's.)
    slab_ref[...] = jnp.zeros_like(slab_ref)
    slab_ref[:, LOGITS_OFF:LOGITS_OFF + OUT_DIM] = logits
    slab_ref[:, PROBAS_OFF:PROBAS_OFF + OUT_DIM] = probas
    slab_ref[:, CATE_OFF:CATE_OFF + NUM_CATEGORIES] = cate_logits
    slab_ref[:, LABEL_OFF:LABEL_OFF + 1] = labels


def _round_up(n, m):
    return (n + m - 1) // m * m


def build_fused_params(params, compute_dtype=jnp.bfloat16):
    """Concatenate / block-diagonalize the two branch MLPs into 3 fused weights."""
    w1s, w2s, ws = params["w1s"], params["w2s"], params["ws"]
    w1c, w2c, wc = params["w1c"], params["w2c"], params["wc"]
    assert OUT_DIM == NUM_CATEGORIES * NUM_CATEGORIES
    assert ws.shape == (H2, OUT_DIM) and wc.shape == (H2, NUM_CATEGORIES)
    assert w2s.shape == (H1, H2) and w2c.shape == (H1, H2)

    w1 = jnp.concatenate([w1s, w1c], axis=1)                      # (D, 256)

    w2 = jnp.zeros((FUSED_H1, FUSED_H2), jnp.float32)             # (256, 128)
    w2 = w2.at[:H1, :H2].set(w2s)
    w2 = w2.at[H1:, H2:].set(w2c)

    w3 = jnp.zeros((FUSED_H2, FUSED_OUT), jnp.float32)            # (128, 32)
    w3 = w3.at[:H2, :OUT_DIM].set(ws)
    w3 = w3.at[H2:, OUT_DIM:OUT_DIM + NUM_CATEGORIES].set(wc)

    # E[i, j] = (j // 5 == i): cate @ E == repeat_interleave(cate, 5, dim=-1)
    expand = (jnp.arange(OUT_DIM)[None, :] // NUM_CATEGORIES
              == jnp.arange(NUM_CATEGORIES)[:, None]).astype(jnp.float32)     # (5, 25)

    return (w1.astype(compute_dtype), w2.astype(compute_dtype),
            w3.astype(compute_dtype), expand)


def _pick_batch_tile(B, D, block_b, itemsize):
    """Largest batch tile <= block_b that keeps double-buffered x, resident
    weights, f32 intermediates and the packed output slab under a scoped-VMEM
    budget that is safe on v5e (16 MiB default) as well as v6e/v7x."""
    budget = 12 * 1024 * 1024
    resident = ((D * FUSED_H1 + FUSED_H1 * FUSED_H2 + FUSED_H2 * FUSED_OUT)
                * itemsize + NUM_CATEGORIES * OUT_DIM * 4)
    tb = _round_up(min(block_b, _round_up(B, 8)), 8)
    while tb > 8:
        need = (2 * tb * D * itemsize                      # x double buffers
                + 2 * tb * SLAB_W * 4                      # slab double buffers
                + tb * (FUSED_H1 + FUSED_H2 + FUSED_OUT) * 4   # f32 intermediates
                + resident)
        if need <= budget:
            break
        tb = _round_up(tb // 2, 8)
    return max(tb, 8)


def classification_head(x, params, *, block_b=512, compute_dtype=jnp.bfloat16):
    """x: (B, latent_dim) f32.  Returns (logits, probas, labels, category)."""
    B, D = x.shape
    w1, w2, w3, expand = build_fused_params(params, compute_dtype)
    itemsize = jnp.dtype(compute_dtype).itemsize

    tb = _pick_batch_tile(B, D, block_b, itemsize)
    b_pad = _round_up(B, tb)
    xp = x.astype(compute_dtype)                  # halve HBM traffic for x
    if b_pad != B:
        xp = jnp.pad(xp, ((0, b_pad - B), (0, 0)))   # pad rows -> finite junk, sliced off

    grid = (b_pad // tb,)

    flops = 2 * b_pad * (D * FUSED_H1 + FUSED_H1 * FUSED_H2
                         + FUSED_H2 * FUSED_OUT + NUM_CATEGORIES * OUT_DIM)
    bytes_accessed = (xp.size * itemsize
                      + (w1.size + w2.size + w3.size) * itemsize
                      + expand.size * 4
                      + b_pad * SLAB_W * 4)

    slab = pl.pallas_call(
        multihead_kernel,
        out_shape=jax.ShapeDtypeStruct((b_pad, SLAB_W), jnp.float32),
        grid_spec=pltpu.PrefetchScalarGridSpec(
            num_scalar_prefetch=0,
            grid=grid,
            in_specs=[
                pl.BlockSpec((tb, D), lambda i: (i, 0)),           # x: tiled over batch
                pl.BlockSpec(w1.shape, lambda i: (0, 0)),          # weights: resident
                pl.BlockSpec(w2.shape, lambda i: (0, 0)),
                pl.BlockSpec(w3.shape, lambda i: (0, 0)),
                pl.BlockSpec(expand.shape, lambda i: (0, 0)),
            ],
            out_specs=pl.BlockSpec((tb, SLAB_W), lambda i: (i, 0)),
        ),
        compiler_params=pltpu.CompilerParams(
            dimension_semantics=("parallel",),          # shard batch over both TCs (v7x)
            vmem_limit_bytes=32 * 1024 * 1024,          # safe on v5e/v6e/v7x
        ),
        cost_estimate=pl.CostEstimate(
            flops=flops,
            transcendentals=b_pad * (OUT_DIM + NUM_CATEGORIES + 2),
            bytes_accessed=bytes_accessed,
        ),
    )(xp, w1, w2, w3, expand)

    slab = slab[:B]
    logits = slab[:, LOGITS_OFF:LOGITS_OFF + OUT_DIM]
    probas = slab[:, PROBAS_OFF:PROBAS_OFF + OUT_DIM]
    category = slab[:, CATE_OFF:CATE_OFF + NUM_CATEGORIES]
    labels = slab[:, LABEL_OFF].astype(jnp.int32)
    return logits, probas, labels, category


def multi_head_forward(representation, params):
    """Mirror of MultiHead.forward: aggregate each head's outputs into a dict.
    The nomenclature.HEADS registry / ModuleDict dispatch is host-side config;
    the single configured head here is the classification head."""
    # TODO(synk): additional registered head kinds would each need their own kernel.
    logits, probas, labels, category = classification_head(representation, params)
    return {"classification": {"logits": logits, "probas": probas,
                               "labels": labels, "category": category}}


def init_params(key, latent_dim):
    """Deterministic synthetic init (~nn.Linear kaiming-uniform scale),
    weights stored as (in_features, out_features)."""
    ks = jax.random.split(key, 6)

    def lin(k, fan_in, fan_out):
        bound = 1.0 / jnp.sqrt(jnp.float32(fan_in))
        return jax.random.uniform(k, (fan_in, fan_out), jnp.float32, -bound, bound)

    return {
        "w1s": lin(ks[0], latent_dim, H1),
        "w2s": lin(ks[1], H1, H2),
        "ws":  lin(ks[2], H2, OUT_DIM),
        "w1c": lin(ks[3], latent_dim, H1),
        "w2c": lin(ks[4], H1, H2),
        "wc":  lin(ks[5], H2, NUM_CATEGORIES),
    }


def reference(x, params):
    """Pure-JAX f32 reference of the PyTorch forward (for sanity check)."""
    cate_logits = x @ params["w1c"] @ params["w2c"] @ params["wc"]
    cate = jax.nn.softmax(cate_logits, axis=-1)
    logits = x @ params["w1s"] @ params["w2s"] @ params["ws"]
    probas = jax.nn.softmax(logits, axis=-1)
    cate_expand = jnp.repeat(cate, NUM_CATEGORIES, axis=-1)
    labels = jnp.argmax(cate_expand + probas, axis=-1).astype(jnp.int32)
    return logits, probas, labels, cate_logits


if __name__ == "__main__":
    key = jax.random.PRNGKey(0)
    kx, kp = jax.random.split(key)

    batch, latent_dim = 8, 32
    x = jax.random.normal(kx, (batch, latent_dim), jnp.float32)
    params = init_params(kp, latent_dim)

    results = multi_head_forward(x, params)
    head = results["classification"]
    logits, probas, labels, category = (head["logits"], head["probas"],
                                        head["labels"], head["category"])
    jax.block_until_ready((logits, probas, labels, category))

    r_logits, r_probas, r_labels, r_category = reference(x, params)

    # bf16 matmul operands -> tolerance-based checks against the f32 reference
    assert bool(jnp.allclose(logits, r_logits, atol=3e-2, rtol=3e-2)), "logits mismatch"
    assert bool(jnp.allclose(probas, r_probas, atol=1e-2, rtol=3e-2)), "probas mismatch"
    assert bool(jnp.allclose(category, r_category, atol=3e-2, rtol=3e-2)), "category mismatch"

    # labels: identical except where the reference score has a near-tie at the
    # top (bf16 matmuls / approx reciprocal can flip exact ties).
    r_sum = jnp.repeat(jax.nn.softmax(r_category, axis=-1), NUM_CATEGORIES, axis=-1) + r_probas
    top2 = jnp.sort(r_sum, axis=-1)[:, -2:]
    gap = top2[:, 1] - top2[:, 0]
    assert bool(jnp.all((labels == r_labels) | (gap < 1e-2))), "labels mismatch"

    print("KERNEL_OK")
</pallas_src>

<mosaic_0001>
module attributes {stable_mosaic.version = 11 : i64} {
  func.func @multihead_kernel(%arg0: i32, %arg1: memref<8x32xbf16, #tpu.memory_space<vmem>>, %arg2: memref<32x256xbf16, #tpu.memory_space<vmem>>, %arg3: memref<256x128xbf16, #tpu.memory_space<vmem>>, %arg4: memref<128x32xbf16, #tpu.memory_space<vmem>>, %arg5: memref<5x25xf32, #tpu.memory_space<vmem>>, %arg6: memref<8x128xf32, #tpu.memory_space<vmem>>) attributes {dimension_semantics = [#tpu.dimension_semantics<parallel>], iteration_bounds = array<i64: 1>, scalar_prefetch = 0 : i64, scratch_operands = 0 : i64, tpu.core_type = #tpu.core_type<tc>, window_params = [{transform_indices = @transform_0, window_bounds = array<i64: 8, 32>}, {pipeline_mode = #tpu.pipeline_mode<synchronous>, transform_indices = @transform_1, window_bounds = array<i64: 32, 256>}, {pipeline_mode = #tpu.pipeline_mode<synchronous>, transform_indices = @transform_2, window_bounds = array<i64: 256, 128>}, {pipeline_mode = #tpu.pipeline_mode<synchronous>, transform_indices = @transform_3, window_bounds = array<i64: 128, 32>}, {pipeline_mode = #tpu.pipeline_mode<synchronous>, transform_indices = @transform_4, window_bounds = array<i64: 5, 25>}, {transform_indices = @transform_5, window_bounds = array<i64: 8, 128>}]} {
    %c0 = arith.constant 0 : index
    %c0_0 = arith.constant 0 : index
    %0 = vector.load %arg1[%c0, %c0_0] : memref<8x32xbf16, #tpu.memory_space<vmem>>, vector<8x32xbf16>
    %c0_1 = arith.constant 0 : index
    %c0_2 = arith.constant 0 : index
    %1 = vector.load %arg2[%c0_1, %c0_2] : memref<32x256xbf16, #tpu.memory_space<vmem>>, vector<32x256xbf16>
    %cst = arith.constant dense<0.000000e+00> : vector<8x256xf32>
    %2 = tpu.matmul %0, %1, %cst {dimension_numbers = #tpu.dot_dimension_numbers<[1], [0], [0], [1], [0, 0, 1, 1], [], []>} : vector<8x32xbf16>, vector<32x256xbf16>, vector<8x256xf32> -> vector<8x256xf32>
    %3 = arith.truncf %2 : vector<8x256xf32> to vector<8x256xbf16>
    %c0_3 = arith.constant 0 : index
    %c0_4 = arith.constant 0 : index
    %4 = vector.load %arg3[%c0_3, %c0_4] : memref<256x128xbf16, #tpu.memory_space<vmem>>, vector<256x128xbf16>
    %cst_5 = arith.constant dense<0.000000e+00> : vector<8x128xf32>
    %5 = tpu.matmul %3, %4, %cst_5 {dimension_numbers = #tpu.dot_dimension_numbers<[1], [0], [0], [1], [0, 0, 1, 1], [], []>} : vector<8x256xbf16>, vector<256x128xbf16>, vector<8x128xf32> -> vector<8x128xf32>
    %6 = arith.truncf %5 : vector<8x128xf32> to vector<8x128xbf16>
    %c0_6 = arith.constant 0 : index
    %c0_7 = arith.constant 0 : index
    %7 = vector.load %arg4[%c0_6, %c0_7] : memref<128x32xbf16, #tpu.memory_space<vmem>>, vector<128x32xbf16>
    %cst_8 = arith.constant dense<0.000000e+00> : vector<8x32xf32>
    %8 = tpu.matmul %6, %7, %cst_8 {dimension_numbers = #tpu.dot_dimension_numbers<[1], [0], [0], [1], [0, 0, 1, 1], [], []>} : vector<8x128xbf16>, vector<128x32xbf16>, vector<8x32xf32> -> vector<8x32xf32>
    %9 = vector.extract_strided_slice %8 {offsets = [0, 0], sizes = [8, 25], strides = [1, 1]} : vector<8x32xf32> to vector<8x25xf32>
    %10 = vector.extract_strided_slice %8 {offsets = [0, 25], sizes = [8, 5], strides = [1, 1]} : vector<8x32xf32> to vector<8x5xf32>
    %cst_9 = arith.constant dense<0xFF800000> : vector<8xf32>
    %11 = vector.multi_reduction <maximumf>, %9, %cst_9 [1] : vector<8x25xf32> to vector<8xf32>
    %12 = vector.shape_cast %11 : vector<8xf32> to vector<8x1xf32>
    %13 = vector.broadcast %12 : vector<8x1xf32> to vector<8x25xf32>
    %14 = arith.subf %9, %13 : vector<8x25xf32>
    %15 = math.exp %14 : vector<8x25xf32>
    %cst_10 = arith.constant dense<0.000000e+00> : vector<8xf32>
    %16 = vector.multi_reduction <add>, %15, %cst_10 [1] : vector<8x25xf32> to vector<8xf32>
    %17 = vector.shape_cast %16 : vector<8xf32> to vector<8x1xf32>
    %18 = tpu.reciprocal %17 {approx = true} : vector<8x1xf32> -> vector<8x1xf32>
    %19 = vector.broadcast %18 : vector<8x1xf32> to vector<8x25xf32>
    %20 = arith.mulf %15, %19 : vector<8x25xf32>
    %cst_11 = arith.constant dense<0xFF800000> : vector<8xf32>
    %21 = vector.multi_reduction <maximumf>, %10, %cst_11 [1] : vector<8x5xf32> to vector<8xf32>
    %22 = vector.shape_cast %21 : vector<8xf32> to vector<8x1xf32>
    %23 = vector.broadcast %22 : vector<8x1xf32> to vector<8x5xf32>
    %24 = arith.subf %10, %23 : vector<8x5xf32>
    %25 = math.exp %24 : vector<8x5xf32>
    %cst_12 = arith.constant dense<0.000000e+00> : vector<8xf32>
    %26 = vector.multi_reduction <add>, %25, %cst_12 [1] : vector<8x5xf32> to vector<8xf32>
    %27 = vector.shape_cast %26 : vector<8xf32> to vector<8x1xf32>
    %28 = tpu.reciprocal %27 {approx = true} : vector<8x1xf32> -> vector<8x1xf32>
    %29 = vector.broadcast %28 : vector<8x1xf32> to vector<8x5xf32>
    %30 = arith.mulf %25, %29 : vector<8x5xf32>
    %c0_13 = arith.constant 0 : index
    %c0_14 = arith.constant 0 : index
    %31 = vector.load %arg5[%c0_13, %c0_14] : memref<5x25xf32, #tpu.memory_space<vmem>>, vector<5x25xf32>
    %cst_15 = arith.constant dense<0.000000e+00> : vector<8x25xf32>
    %32 = tpu.matmul %30, %31, %cst_15 {dimension_numbers = #tpu.dot_dimension_numbers<[1], [0], [0], [1], [0, 0, 1, 1], [], []>} : vector<8x5xf32>, vector<5x25xf32>, vector<8x25xf32> -> vector<8x25xf32>
    %33 = arith.addf %32, %20 : vector<8x25xf32>
    %cst_16 = arith.constant dense<0xFF800000> : vector<8xf32>
    %34 = vector.multi_reduction <maximumf>, %33, %cst_16 [1] : vector<8x25xf32> to vector<8xf32>
    %35 = vector.shape_cast %34 : vector<8xf32> to vector<8x1xf32>
    %36 = tpu.iota {dimensions = array<i32: 1>} : vector<8x25xi32>
    %37 = vector.broadcast %35 : vector<8x1xf32> to vector<8x25xf32>
    %38 = arith.cmpf oeq, %33, %37 : vector<8x25xf32>
    %c2147483647_i32 = arith.constant 2147483647 : i32
    %39 = vector.broadcast %c2147483647_i32 : i32 to vector<8x25xi32>
    %40 = arith.select %38, %36, %39 : vector<8x25xi1>, vector<8x25xi32>
    %cst_17 = arith.constant dense<2147483647> : vector<8xi32>
    %41 = vector.multi_reduction <minsi>, %40, %cst_17 [1] : vector<8x25xi32> to vector<8xi32>
    %42 = vector.shape_cast %41 : vector<8xi32> to vector<8x1xi32>
    %43 = arith.sitofp %42 : vector<8x1xi32> to vector<8x1xf32>
    %cst_18 = arith.constant 0.000000e+00 : f32
    %44 = vector.broadcast %cst_18 : f32 to vector<8x128xf32>
    %c0_19 = arith.constant 0 : index
    %c0_20 = arith.constant 0 : index
    %45 = vector.load %arg6[%c0_19, %c0_20] : memref<8x128xf32, #tpu.memory_space<vmem>>, vector<8x128xf32>
    tpu.vector_store %arg6[%c0_19, %c0_20], %44 {strides = array<i32>} : memref<8x128xf32, #tpu.memory_space<vmem>>, vector<8x128xf32>,
    %c0_21 = arith.constant 0 : index
    %c0_22 = arith.constant 0 : index
    %46 = vector.load %arg6[%c0_21, %c0_22] : memref<8x128xf32, #tpu.memory_space<vmem>>, vector<8x25xf32>
    tpu.vector_store %arg6[%c0_21, %c0_22], %9 {strides = array<i32>} : memref<8x128xf32, #tpu.memory_space<vmem>>, vector<8x25xf32>,
    %c0_23 = arith.constant 0 : index
    %c32 = arith.constant 32 : index
    %47 = vector.load %arg6[%c0_23, %c32] : memref<8x128xf32, #tpu.memory_space<vmem>>, vector<8x25xf32>
    tpu.vector_store %arg6[%c0_23, %c32], %20 {strides = array<i32>} : memref<8x128xf32, #tpu.memory_space<vmem>>, vector<8x25xf32>,
    %c0_24 = arith.constant 0 : index
    %c64 = arith.constant 64 : index
    %48 = vector.load %arg6[%c0_24, %c64] : memref<8x128xf32, #tpu.memory_space<vmem>>, vector<8x5xf32>
    tpu.vector_store %arg6[%c0_24, %c64], %10 {strides = array<i32>} : memref<8x128xf32, #tpu.memory_space<vmem>>, vector<8x5xf32>,
    %c0_25 = arith.constant 0 : index
    %c96 = arith.constant 96 : index
    %49 = vector.load %arg6[%c0_25, %c96] : memref<8x128xf32, #tpu.memory_space<vmem>>, vector<8x1xf32>
    tpu.vector_store %arg6[%c0_25, %c96], %43 {strides = array<i32>} : memref<8x128xf32, #tpu.memory_space<vmem>>, vector<8x1xf32>,
    return
  }
  func.func @transform_0(%arg0: i32) -> (i32, i32) {
    %c0_i32 = arith.constant 0 : i32
    %c0_i32_0 = arith.constant 0 : i32
    return %arg0, %c0_i32 : i32, i32
  }
  func.func @transform_1(%arg0: i32) -> (i32, i32) {
    %c0_i32 = arith.constant 0 : i32
    %c0_i32_0 = arith.constant 0 : i32
    %c0_i32_1 = arith.constant 0 : i32
    return %c0_i32, %c0_i32_0 : i32, i32
  }
  func.func @transform_2(%arg0: i32) -> (i32, i32) {
    %c0_i32 = arith.constant 0 : i32
    %c0_i32_0 = arith.constant 0 : i32
    %c0_i32_1 = arith.constant 0 : i32
    return %c0_i32, %c0_i32_0 : i32, i32
  }
  func.func @transform_3(%arg0: i32) -> (i32, i32) {
    %c0_i32 = arith.constant 0 : i32
    %c0_i32_0 = arith.constant 0 : i32
    %c0_i32_1 = arith.constant 0 : i32
    return %c0_i32, %c0_i32_0 : i32, i32
  }
  func.func @transform_4(%arg0: i32) -> (i32, i32) {
    %c0_i32 = arith.constant 0 : i32
    %c0_i32_0 = arith.constant 0 : i32
    %c0_i32_1 = arith.constant 0 : i32
    return %c0_i32, %c0_i32_0 : i32, i32
  }
  func.func @transform_5(%arg0: i32) -> (i32, i32) {
    %c0_i32 = arith.constant 0 : i32
    %c0_i32_0 = arith.constant 0 : i32
    return %arg0, %c0_i32 : i32, i32
  }
}

</mosaic_0001>

<llo_original>
// kernel: tpu_custom_call.1
$region0: #{tpu_custom_call.1}
  #allocation0 [shape = 'u32[]', space=smem, size = 0x4, offset = 0x4, fixed_abs, tag = 'smem constant byte address 0x4 - core index']
  #allocation1 [shape = 'u32[144,128]{1,0:T(1,128)}', space=vmem, size = 0x12000, scoped, tag = 'internal scratch']
  %s0 = inlined_call_operand.vmem [shape: bf16[8,32], index: 0, kind: input, shape index: {}]
  %s1 = inlined_call_operand.vmem [shape: bf16[32,256], index: 1, kind: input, shape index: {}]
  %s2 = inlined_call_operand.hbm [shape: bf16[256,128], index: 2, kind: input, shape index: {}]
  %s3 = inlined_call_operand.vmem [shape: bf16[128,32], index: 3, kind: input, shape index: {}]
  %s4 = inlined_call_operand.vmem [shape: f32[5,25], index: 4, kind: input, shape index: {}]
  %s5 = inlined_call_operand.hbm [shape: f32[8,128], index: 5, kind: output, shape index: {}]
  %s6 = sld [smem:[#allocation0]]
  $region34: #{tpu_custom_call.1} parent=0
    _
  %s8 = ssub.s32 1, %s6
  %s9 = scalar_select 0, %s8, %s6
  $region1: #{tpu_custom_call.1} parent=0
    #allocation2 [shape = 'u8[65536]{0}', space=vmem, size = 0x10000, scoped, tag = 'input window, operand 2, single buffered']
    #allocation3 [shape = 's32[1]{0}', space=sflag, size = 0x4, scoped, tag = 'scoped memory for tpu_custom_call.1']
    #allocation4 [shape = 's32[1]{0}', space=sflag, size = 0x4, scoped, tag = 'scoped memory for tpu_custom_call.1']
    #allocation5 [shape = 'u8[4096]{0}', space=vmem, size = 0x1000, scoped, tag = 'output window, operand 0, single buffered']
    %10 = vsyncpa [#allocation3], 0
    %11 = vsyncpa [#allocation4], 0
    // Predicated region
    $region2: #{tpu_custom_call.1} parent=1 // pred_check
      _
    $region3: #{tpu_custom_call.1} parent=1 // pred_check_branch
      %13 = sbr.rel (0) target = $region5
    $region4: #{tpu_custom_call.1} parent=1 // pred_region
      _
    $region5: #{tpu_custom_call.1} parent=1 // pred_fallthru
      _
    // Predicated region
    $region6: #{tpu_custom_call.1} parent=1 // pred_check
      _
    $region7: #{tpu_custom_call.1} parent=1 // pred_check_branch
      %15 = sbr.rel (0) target = $region9
    $region8: #{tpu_custom_call.1} parent=1 // pred_region
      _
    $region9: #{tpu_custom_call.1} parent=1 // pred_fallthru
      _
    // Predicated region
    $region10: #{tpu_custom_call.1} parent=1 // pred_check
      _
    $region11: #{tpu_custom_call.1} parent=1 // pred_check_branch
      %17 = sbr.rel (0) target = $region13
    $region12: #{tpu_custom_call.1} parent=1 // pred_region
      %s19 = ssub.s32 2048, 2048
      %20 = vsyncadd [#allocation3], %s19
      %s21 = sshll.u32 [#allocation2], 4
      %s22 = int_to_ptr.vmem [resolvable:$true] %s21
      %27 = dma.hbm_to_vmem [thread:$0]  %s2, 2048, %s22, [#allocation3], 64, 64, 4
    $region13: #{tpu_custom_call.1} parent=1 // pred_fallthru
      _
    // Predicated region
    $region14: #{tpu_custom_call.1} parent=1 // pred_check
      _
    $region15: #{tpu_custom_call.1} parent=1 // pred_check_branch
      %29 = sbr.rel (0) target = $region17
    $region16: #{tpu_custom_call.1} parent=1 // pred_region
      _
    $region17: #{tpu_custom_call.1} parent=1 // pred_fallthru
      _
    // Predicated region
    $region18: #{tpu_custom_call.1} parent=1 // pred_check
      _
    $region19: #{tpu_custom_call.1} parent=1 // pred_check_branch
      %31 = sbr.rel (0) target = $region21
    $region20: #{tpu_custom_call.1} parent=1 // pred_region
      _
    $region21: #{tpu_custom_call.1} parent=1 // pred_fallthru
      _
    // Predicated region
    $region22: #{tpu_custom_call.1} parent=1 // pred_check
      _
    $region23: #{tpu_custom_call.1} parent=1 // pred_check_branch
      %33 = sbr.rel (0) target = $region25
    $region24: #{tpu_custom_call.1} parent=1 // pred_region
      %34 = dma.done [#allocation3], 2048
    $region25: #{tpu_custom_call.1} parent=1 // pred_fallthru
      _
    %v36 = vld [vmem:[%s0] sm:$0xf]
    %v37 = vld [vmem:[%s1] sm:$0xff]
    %v38 = vld [vmem:[%s1 + $0x8] sm:$0xff]
    %v39 = vld [vmem:[%s1 + $0x10] sm:$0xff]
    %v40 = vld [vmem:[%s1 + $0x18] sm:$0xff]
    %v45 = vunpack.c.l.b16 %v37
    %v46 = vunpack.c.h.b16 %v37
    %v47 = vunpack.c.l.b16 %v38
    %v48 = vunpack.c.h.b16 %v38
    %v49 = vunpack.c.l.b16 %v39
    %v50 = vunpack.c.h.b16 %v39
    %v51 = vunpack.c.l.b16 %v40
    %v52 = vunpack.c.h.b16 %v40
    %v53 = vpack.c.b16 %v47, %v45
    %v54 = vpack.c.b16 %v48, %v46
    %v55 = vpack.c.b16 %v51, %v49
    %v56 = vpack.c.b16 %v52, %v50
    %vm61 = vcmask 261120
    %v63 = vsel %vm61, %v36, 0
    %65 = vmatprep.subr.bf16.mxu0 %v54
    %66 = vmatpush1.bf16.msra.mxu0 %v53
    %67 = vmatprep.subr.bf16.mxu0 %v56
    %68 = vmatpush1.bf16.msra.mxu0 %v55
    %69 = vmatprep.subr.bf16.mxu0 0
    %70 = vmatpush1.bf16.msra.mxu0 0
    %71 = vmatprep.subr.bf16.mxu0 0
    %72 = vmatpush1.bf16.msra.mxu0 0
    %73 = vmatprep.subr.bf16.mxu0 0
    %74 = vmatpush1.bf16.msra.mxu0 0
    %75 = vmatprep.subr.bf16.mxu0 0
    %76 = vmatpush1.bf16.msra.mxu0 0
    %77 = vmatprep.subr.bf16.mxu0 0
    %78 = vmatpush1.bf16.msra.mxu0 0
    %79 = vmatprep.subr.bf16.mxu0 0
    %80 = vmatpush1.bf16.msra.mxu0 0
    %81 = vmatprep.subr.bf16.mxu0 0
    %82 = vmatpush1.bf16.msra.mxu0 0
    %83 = vmatprep.subr.bf16.mxu0 0
    %84 = vmatpush1.bf16.msra.mxu0 0
    %85 = vmatprep.subr.bf16.mxu0 0
    %86 = vmatpush1.bf16.msra.mxu0 0
    %87 = vmatprep.subr.bf16.mxu0 0
    %88 = vmatpush1.bf16.msra.mxu0 0
    %89 = vmatprep.subr.bf16.mxu0 0
    %90 = vmatpush1.bf16.msra.mxu0 0
    %91 = vmatprep.subr.bf16.mxu0 0
    %92 = vmatpush1.bf16.msra.mxu0 0
    %93 = vmatprep.subr.bf16.mxu0 0
    %94 = vmatpush1.bf16.msra.mxu0 0
    %95 = vmatprep.subr.bf16.mxu0 0
    %96 = vmatpush1.bf16.msra.mxu0 0
    %97 = vmatprep.mubr.bf16.mxu0 0
    %98 = vmatmul.mubr.bf16.gmra.mrb[0].mxu0 %v63
    %v99 = vpop.f32.mrb[0].mxu0
    %v100 = vadd.f32 0.0, %v99
    %v101 = vpop.f32.mrb[0].mxu0
    %v102 = vadd.f32 0.0, %v101
    %v103 = vpop.f32.mrb[0].mxu0
    %v104 = vpop.f32.mrb[0].mxu0
    %105 = vdwg.mxu0
    %v106 = vpack.c.bf16 %v100, %v100
    %v107 = vpack.c.bf16 %v102, %v102
    %v108 = vld [vmem:[#allocation2] sm:$0xf]
    %v109 = vld [vmem:[#allocation2 + $0x4] sm:$0xf]
    %v110 = vld [vmem:[#allocation2 + $0x8] sm:$0xf]
    %v111 = vld [vmem:[#allocation2 + $0xc] sm:$0xf]
    %v112 = vld [vmem:[#allocation2 + $0x10] sm:$0xf]
    %v113 = vld [vmem:[#allocation2 + $0x14] sm:$0xf]
    %v114 = vld [vmem:[#allocation2 + $0x18] sm:$0xf]
    %v115 = vld [vmem:[#allocation2 + $0x1c] sm:$0xf]
    %v116 = vld [vmem:[#allocation2 + $0x20] sm:$0xf]
    %v117 = vld [vmem:[#allocation2 + $0x24] sm:$0xf]
    %v118 = vld [vmem:[#allocation2 + $0x28] sm:$0xf]
    %v119 = vld [vmem:[#allocation2 + $0x2c] sm:$0xf]
    %v120 = vld [vmem:[#allocation2 + $0x30] sm:$0xf]
    %v121 = vld [vmem:[#allocation2 + $0x34] sm:$0xf]
    %v122 = vld [vmem:[#allocation2 + $0x38] sm:$0xf]
    %v123 = vld [vmem:[#allocation2 + $0x3c] sm:$0xf]
    %v124 = vld [vmem:[#allocation2 + $0x40] sm:$0xf]
    %v125 = vld [vmem:[#allocation2 + $0x44] sm:$0xf]
    %v126 = vld [vmem:[#allocation2 + $0x48] sm:$0xf]
    %v127 = vld [vmem:[#allocation2 + $0x4c] sm:$0xf]
    %v128 = vld [vmem:[#allocation2 + $0x50] sm:$0xf]
    %v129 = vld [vmem:[#allocation2 + $0x54] sm:$0xf]
    %v130 = vld [vmem:[#allocation2 + $0x58] sm:$0xf]
    %v131 = vld [vmem:[#allocation2 + $0x5c] sm:$0xf]
    %v132 = vld [vmem:[#allocation2 + $0x60] sm:$0xf]
    %v133 = vld [vmem:[#allocation2 + $0x64] sm:$0xf]
    %v134 = vld [vmem:[#allocation2 + $0x68] sm:$0xf]
    %v135 = vld [vmem:[#allocation2 + $0x6c] sm:$0xf]
    %v136 = vld [vmem:[#allocation2 + $0x70] sm:$0xf]
    %v137 = vld [vmem:[#allocation2 + $0x74] sm:$0xf]
    %v138 = vld [vmem:[#allocation2 + $0x78] sm:$0xf]
    %v139 = vld [vmem:[#allocation2 + $0x7c] sm:$0xf]
    %v172 = vunpack.c.l.b16 %v108
    %v173 = vunpack.c.l.b16 %v109
    %v174 = vunpack.c.l.b16 %v110
    %v175 = vunpack.c.l.b16 %v111
    %v176 = vunpack.c.l.b16 %v112
    %v177 = vunpack.c.l.b16 %v113
    %v178 = vunpack.c.l.b16 %v114
    %v179 = vunpack.c.l.b16 %v115
    %v180 = vunpack.c.l.b16 %v116
    %v181 = vunpack.c.l.b16 %v117
    %v182 = vunpack.c.l.b16 %v118
    %v183 = vunpack.c.l.b16 %v119
    %v184 = vunpack.c.l.b16 %v120
    %v185 = vunpack.c.l.b16 %v121
    %v186 = vunpack.c.l.b16 %v122
    %v187 = vunpack.c.l.b16 %v123
    %v188 = vunpack.c.l.b16 %v124
    %v189 = vunpack.c.l.b16 %v125
    %v190 = vunpack.c.l.b16 %v126
    %v191 = vunpack.c.l.b16 %v127
    %v192 = vunpack.c.l.b16 %v128
    %v193 = vunpack.c.l.b16 %v129
    %v194 = vunpack.c.l.b16 %v130
    %v195 = vunpack.c.l.b16 %v131
    %v196 = vunpack.c.l.b16 %v132
    %v197 = vunpack.c.l.b16 %v133
    %v198 = vunpack.c.l.b16 %v134
    %v199 = vunpack.c.l.b16 %v135
    %v200 = vunpack.c.l.b16 %v136
    %v201 = vunpack.c.l.b16 %v137
    %v202 = vunpack.c.l.b16 %v138
    %v203 = vunpack.c.l.b16 %v139
    %v204 = vpack.c.b16 %v173, %v172
    %v205 = vpack.c.b16 %v175, %v174
    %v206 = vpack.c.b16 %v177, %v176
    %v207 = vpack.c.b16 %v179, %v178
    %v208 = vpack.c.b16 %v181, %v180
    %v209 = vpack.c.b16 %v183, %v182
    %v210 = vpack.c.b16 %v185, %v184
    %v211 = vpack.c.b16 %v187, %v186
    %v212 = vpack.c.b16 %v189, %v188
    %v213 = vpack.c.b16 %v191, %v190
    %v214 = vpack.c.b16 %v193, %v192
    %v215 = vpack.c.b16 %v195, %v194
    %v216 = vpack.c.b16 %v197, %v196
    %v217 = vpack.c.b16 %v199, %v198
    %v218 = vpack.c.b16 %v201, %v200
    %v219 = vpack.c.b16 %v203, %v202
    %236 = vmatprep.subr.bf16.mxu0 0
    %237 = vmatpush1.bf16.msra.mxu0 %v204
    %238 = vmatprep.subr.bf16.mxu0 0
    %239 = vmatpush1.bf16.msra.mxu0 %v205
    %240 = vmatprep.subr.bf16.mxu0 0
    %241 = vmatpush1.bf16.msra.mxu0 %v206
    %242 = vmatprep.subr.bf16.mxu0 0
    %243 = vmatpush1.bf16.msra.mxu0 %v207
    %244 = vmatprep.subr.bf16.mxu0 0
    %245 = vmatpush1.bf16.msra.mxu0 %v208
    %246 = vmatprep.subr.bf16.mxu0 0
    %247 = vmatpush1.bf16.msra.mxu0 %v209
    %248 = vmatprep.subr.bf16.mxu0 0
    %249 = vmatpush1.bf16.msra.mxu0 %v210
    %250 = vmatprep.subr.bf16.mxu0 0
    %251 = vmatpush1.bf16.msra.mxu0 %v211
    %252 = vmatprep.subr.bf16.mxu0 0
    %253 = vmatpush1.bf16.msra.mxu0 %v212
    %254 = vmatprep.subr.bf16.mxu0 0
    %255 = vmatpush1.bf16.msra.mxu0 %v213
    %256 = vmatprep.subr.bf16.mxu0 0
    %257 = vmatpush1.bf16.msra.mxu0 %v214
    %258 = vmatprep.subr.bf16.mxu0 0
    %259 = vmatpush1.bf16.msra.mxu0 %v215
    %260 = vmatprep.subr.bf16.mxu0 0
    %261 = vmatpush1.bf16.msra.mxu0 %v216
    %262 = vmatprep.subr.bf16.mxu0 0
    %263 = vmatpush1.bf16.msra.mxu0 %v217
    %264 = vmatprep.subr.bf16.mxu0 0
    %265 = vmatpush1.bf16.msra.mxu0 %v218
    %266 = vmatprep.subr.bf16.mxu0 0
    %267 = vmatpush1.bf16.msra.mxu0 %v219
    %268 = vmatprep.mubr.bf16.mxu0 %v107
    %269 = vmatmul.mubr.bf16.gmra.mrb[0].mxu0 %v106
    %v270 = vpop.f32.mrb[0].mxu0
    %v271 = vadd.f32 0.0, %v270
    %v272 = vpop.f32.mrb[0].mxu0
    %v273 = vpop.f32.mrb[0].mxu0
    %v274 = vpop.f32.mrb[0].mxu0
    %275 = vdwg.mxu0
    %v276 = vpack.c.bf16 %v271, %v271
    %v277 = vld [vmem:[%s3] sm:$0xf]
    %v278 = vld [vmem:[%s3 + $0x4] sm:$0xf]
    %v279 = vld [vmem:[%s3 + $0x8] sm:$0xf]
    %v280 = vld [vmem:[%s3 + $0xc] sm:$0xf]
    %v281 = vld [vmem:[%s3 + $0x10] sm:$0xf]
    %v282 = vld [vmem:[%s3 + $0x14] sm:$0xf]
    %v283 = vld [vmem:[%s3 + $0x18] sm:$0xf]
    %v284 = vld [vmem:[%s3 + $0x1c] sm:$0xf]
    %v285 = vld [vmem:[%s3 + $0x20] sm:$0xf]
    %v286 = vld [vmem:[%s3 + $0x24] sm:$0xf]
    %v287 = vld [vmem:[%s3 + $0x28] sm:$0xf]
    %v288 = vld [vmem:[%s3 + $0x2c] sm:$0xf]
    %v289 = vld [vmem:[%s3 + $0x30] sm:$0xf]
    %v290 = vld [vmem:[%s3 + $0x34] sm:$0xf]
    %v291 = vld [vmem:[%s3 + $0x38] sm:$0xf]
    %v292 = vld [vmem:[%s3 + $0x3c] sm:$0xf]
    %v309 = vunpack.c.l.b16 %v277
    %v310 = vunpack.c.l.b16 %v278
    %v311 = vunpack.c.l.b16 %v279
    %v312 = vunpack.c.l.b16 %v280
    %v313 = vunpack.c.l.b16 %v281
    %v314 = vunpack.c.l.b16 %v282
    %v315 = vunpack.c.l.b16 %v283
    %v316 = vunpack.c.l.b16 %v284
    %v317 = vunpack.c.l.b16 %v285
    %v318 = vunpack.c.l.b16 %v286
    %v319 = vunpack.c.l.b16 %v287
    %v320 = vunpack.c.l.b16 %v288
    %v321 = vunpack.c.l.b16 %v289
    %v322 = vunpack.c.l.b16 %v290
    %v323 = vunpack.c.l.b16 %v291
    %v324 = vunpack.c.l.b16 %v292
    %v325 = vpack.c.b16 %v310, %v309
    %v326 = vpack.c.b16 %v312, %v311
    %v327 = vpack.c.b16 %v314, %v313
    %v328 = vpack.c.b16 %v316, %v315
    %v329 = vpack.c.b16 %v318, %v317
    %v330 = vpack.c.b16 %v320, %v319
    %v331 = vpack.c.b16 %v322, %v321
    %v332 = vpack.c.b16 %v324, %v323
    %341 = vmatprep.subr.bf16.mxu0 0
    %342 = vmatpush1.bf16.msra.mxu0 %v325
    %343 = vmatprep.subr.bf16.mxu0 0
    %344 = vmatpush1.bf16.msra.mxu0 %v326
    %345 = vmatprep.subr.bf16.mxu0 0
    %346 = vmatpush1.bf16.msra.mxu0 %v327
    %347 = vmatprep.subr.bf16.mxu0 0
    %348 = vmatpush1.bf16.msra.mxu0 %v328
    %349 = vmatprep.subr.bf16.mxu0 0
    %350 = vmatpush1.bf16.msra.mxu0 %v329
    %351 = vmatprep.subr.bf16.mxu0 0
    %352 = vmatpush1.bf16.msra.mxu0 %v330
    %353 = vmatprep.subr.bf16.mxu0 0
    %354 = vmatpush1.bf16.msra.mxu0 %v331
    %355 = vmatprep.subr.bf16.mxu0 0
    %356 = vmatpush1.bf16.msra.mxu0 %v332
    %357 = vmatprep.subr.bf16.mxu0 0
    %358 = vmatpush1.bf16.msra.mxu0 0
    %359 = vmatprep.subr.bf16.mxu0 0
    %360 = vmatpush1.bf16.msra.mxu0 0
    %361 = vmatprep.subr.bf16.mxu0 0
    %362 = vmatpush1.bf16.msra.mxu0 0
    %363 = vmatprep.subr.bf16.mxu0 0
    %364 = vmatpush1.bf16.msra.mxu0 0
    %365 = vmatprep.subr.bf16.mxu0 0
    %366 = vmatpush1.bf16.msra.mxu0 0
    %367 = vmatprep.subr.bf16.mxu0 0
    %368 = vmatpush1.bf16.msra.mxu0 0
    %369 = vmatprep.subr.bf16.mxu0 0
    %370 = vmatpush1.bf16.msra.mxu0 0
    %371 = vmatprep.subr.bf16.mxu0 0
    %372 = vmatpush1.bf16.msra.mxu0 0
    %373 = vmatprep.mubr.bf16.mxu0 0
    %374 = vmatmul.mubr.bf16.gmra.mrb[0].mxu0 %v276
    %v375 = vpop.f32.mrb[0].mxu0
    %v376 = vadd.f32 0.0, %v375
    %v377 = vpop.f32.mrb[0].mxu0
    %v378 = vpop.f32.mrb[0].mxu0
    %v379 = vpop.f32.mrb[0].mxu0
    %380 = vdwg.mxu0
    %vm381 = vcmask 203776
    %v382 = vsel %vm381, %v376, -inf
    %383 = vmax.xlane.f32.xlu0 %v382
    %v384 = vpop.xlane.xlu0 %383
    %v385 = vsub.f32 %v376, %v384
    %v386 = vmul.f32 %v385, 1.442695
    %v387 = vpow.pop %v386
    %v388 = vsel %vm381, %v387, 0.0
    %389 = vadd.xlane.f32.xlu0 %v388
    %v390 = vpop.xlane.xlu0 %389
    %v391 = vrcp.pop %v390
    %v392 = vmul.f32 %v387, %v391
    %vm393 = vcmask 244936
    %v394 = vsel %vm393, %v376, -inf
    %395 = vmax.xlane.f32.xlu0 %v394
    %v396 = vpop.xlane.xlu0 %395
    %v397 = vsub.f32 %v376, %v396
    %v398 = vmul.f32 %v397, 1.442695
    %v399 = vpow.pop %v398
    %401 = vrot.lane.b32.xlu0 %v399, 103
    %v402 = vpop.permute.xlu0 %401
    %vm404 = vcmask 39936
    %v405 = vsel %vm404, %v402, 0.0
    %406 = vadd.xlane.f32.xlu0 %v405
    %v407 = vpop.xlane.xlu0 %406
    %v408 = vrcp.pop %v407
    %v409 = vmul.f32 %v399, %v408
    %v410 = vld [vmem:[%s4] sm:$0x1f]
    %412 = vrot.lane.b32.xlu0 %v409, 103
    %v413 = vpop.permute.xlu0 %412
    %v414 = vsel %vm404, %v413, 0
    %vm416 = vcmask 1044480
    %v418 = vsel %vm416, %v410, 0
    %420 = vmatprep.subr.mxu0 0.0
    %421 = vmatpush1.msra.mxu0 %v418
    %422 = vmatprep.subr.mxu0 0.0
    %423 = vmatpush1.msra.mxu0 0.0
    %424 = vmatprep.subr.mxu0 0.0
    %425 = vmatpush1.msra.mxu0 0.0
    %426 = vmatprep.subr.mxu0 0.0
    %427 = vmatpush1.msra.mxu0 0.0
    %428 = vmatprep.subr.mxu0 0.0
    %429 = vmatpush1.msra.mxu0 0.0
    %430 = vmatprep.subr.mxu0 0.0
    %431 = vmatpush1.msra.mxu0 0.0
    %432 = vmatprep.subr.mxu0 0.0
    %433 = vmatpush1.msra.mxu0 0.0
    %434 = vmatprep.subr.mxu0 0.0
    %435 = vmatpush1.msra.mxu0 0.0
    %436 = vmatprep.subr.mxu0 0.0
    %437 = vmatpush1.msra.mxu0 0.0
    %438 = vmatprep.subr.mxu0 0.0
    %439 = vmatpush1.msra.mxu0 0.0
    %440 = vmatprep.subr.mxu0 0.0
    %441 = vmatpush1.msra.mxu0 0.0
    %442 = vmatprep.subr.mxu0 0.0
    %443 = vmatpush1.msra.mxu0 0.0
    %444 = vmatprep.subr.mxu0 0.0
    %445 = vmatpush1.msra.mxu0 0.0
    %446 = vmatprep.subr.mxu0 0.0
    %447 = vmatpush1.msra.mxu0 0.0
    %448 = vmatprep.subr.mxu0 0.0
    %449 = vmatpush1.msra.mxu0 0.0
    %450 = vmatprep.subr.mxu0 0.0
    %451 = vmatpush1.msra.mxu0 0.0
    %452 = vmatprep.subr.mxu0 0.0
    %453 = vmatpush1.msra.mxu0 0.0
    %454 = vmatprep.subr.mxu0 0.0
    %455 = vmatpush1.msra.mxu0 0.0
    %456 = vmatprep.subr.mxu0 0.0
    %457 = vmatpush1.msra.mxu0 0.0
    %458 = vmatprep.subr.mxu0 0.0
    %459 = vmatpush1.msra.mxu0 0.0
    %460 = vmatprep.subr.mxu0 0.0
    %461 = vmatpush1.msra.mxu0 0.0
    %462 = vmatprep.subr.mxu0 0.0
    %463 = vmatpush1.msra.mxu0 0.0
    %464 = vmatprep.subr.mxu0 0.0
    %465 = vmatpush1.msra.mxu0 0.0
    %466 = vmatprep.subr.mxu0 0.0
    %467 = vmatpush1.msra.mxu0 0.0
    %468 = vmatprep.subr.mxu0 0.0
    %469 = vmatpush1.msra.mxu0 0.0
    %470 = vmatprep.subr.mxu0 0.0
    %471 = vmatpush1.msra.mxu0 0.0
    %472 = vmatprep.subr.mxu0 0.0
    %473 = vmatpush1.msra.mxu0 0.0
    %474 = vmatprep.subr.mxu0 0.0
    %475 = vmatpush1.msra.mxu0 0.0
    %476 = vmatprep.subr.mxu0 0.0
    %477 = vmatpush1.msra.mxu0 0.0
    %478 = vmatprep.subr.mxu0 0.0
    %479 = vmatpush1.msra.mxu0 0.0
    %480 = vmatprep.subr.mxu0 0.0
    %481 = vmatpush1.msra.mxu0 0.0
    %482 = vmatprep.subr.mxu0 0.0
    %483 = vmatpush1.msra.mxu0 0.0
    %484 = vmatprep.mubr.f32.mxu0 0.0
    %485 = vmatmul.mubr.f32.gmra.mrb[0].mxu0 %v414
    %v486 = vpop.f32.mrb[0].mxu0
    %v487 = vadd.f32 %v392, %v486
    %v488 = vpop.f32.mrb[0].mxu0
    %489 = vdwg.mxu0
    %v490 = vsel %vm381, %v487, -inf
    %491 = vmax.xlane.f32.xlu0 %v490
    %v492 = vpop.xlane.xlu0 %491
    %v493 = vlaneseq
    %v494 = vand.u32 %v493, 127
    %vm495 = vcmp.eq.f32.partialorder %v487, %v492
    %v496 = vsel %vm495, %v494, 2147483647
    %v497 = vsel %vm381, %v496, 2147483647
    %v498 = vand.u32 %v497, 65535
    %v499 = vshra.s32 %v497, 16
    %v500 = vcvt.s32.f32 %v498
    %v501 = vcvt.s32.f32 %v499
    %502 = vmin.xlane.f32.xlu0 %v501
    %v503 = vpop.xlane.xlu0 %502
    %vm504 = vcmp.eq.f32.partialorder %v501, %v503
    %v505 = vsel %vm504, %v500, inf
    %506 = vmin.xlane.f32.xlu0 %v505
    %v507 = vpop.xlane.xlu0 %506
    %v508 = vcvt.f32.s32 %v507
    %v509 = vcvt.f32.s32 %v503
    %v510 = vshll.u32 %v509, 16
    %v511 = vadd.s32 %v510, %v508
    %v512 = vcvt.s32.f32 %v511
    %513 = vst [vmem:[#allocation5] sm:$0xff] 0.0
    %514 = vst.msk [vmem:[#allocation5] sm:$0xff] %vm381, %v376
    %516 = vrot.lane.b32.xlu0 %v392, 32
    %v517 = vpop.permute.xlu0 %516
    %vm519 = vcmask 466176
    %520 = vst.msk [vmem:[#allocation5] sm:$0xff] %vm519, %v517
    %522 = vrot.lane.b32.xlu0 %v376, 39
    %v523 = vpop.permute.xlu0 %522
    %vm525 = vcmask 564736
    %526 = vst.msk [vmem:[#allocation5] sm:$0xff] %vm525, %v523
    %vm527 = vcmask 794368
    %528 = vst.msk [vmem:[#allocation5] sm:$0xff] %vm527, %v512
    // Predicated region
    $region26: #{tpu_custom_call.1} parent=1 // pred_check
      _
    $region27: #{tpu_custom_call.1} parent=1 // pred_check_branch
      %530 = sbr.rel (0) target = $region29
    $region28: #{tpu_custom_call.1} parent=1 // pred_region
      %s532 = ssub.s32 128, 128
      %533 = vsyncadd [#allocation4], %s532
      %s535 = sshll.u32 [#allocation5], 4
      %s536 = int_to_ptr.vmem [resolvable:$true] %s535
      %538 = dma.vmem_to_hbm [thread:$0]  %s536, 128, %s5, [#allocation4]
    $region29: #{tpu_custom_call.1} parent=1 // pred_fallthru
      _
    // Predicated region
    $region30: #{tpu_custom_call.1} parent=1 // pred_check
      _
    $region31: #{tpu_custom_call.1} parent=1 // pred_check_branch
      %540 = sbr.rel (0) target = $region33
    $region32: #{tpu_custom_call.1} parent=1 // pred_region
      %541 = dma.done [#allocation4], 128
    $region33: #{tpu_custom_call.1} parent=1 // pred_fallthru
      _
    %542 = vsyncpa [#allocation3], 1
    %543 = vsyncpa [#allocation4], 1

</llo_original>
